<compile_context>
chip_gen: v7x
topology: tpu7x:2x2x1
jax: 0.10.0
libtpu: 0.0.40
codegen_flags: <defaults>
</compile_context>

<pallas_src>
import functools
import math

import jax
import jax.numpy as jnp
from jax import lax
from jax.experimental import pallas as pl
from jax.experimental.pallas import tpu as pltpu

# bf16 is the native MXU dtype on all generations; accumulation stays f32.
COMPUTE_DTYPE = jnp.bfloat16


def _vmem_limit_bytes():
    """Generation-aware scoped-VMEM limit (v7x has 64 MiB, v5e/v6e 128 MiB)."""
    try:
        cap = pltpu.get_tpu_info().vmem_capacity_bytes
    except Exception:
        cap = 128 * 1024 * 1024
    return min(64 * 1024 * 1024, int(cap * 0.6))


_VMEM_LIMIT = _vmem_limit_bytes()


def _choose_tile(dim, candidates):
    """Largest candidate that evenly divides `dim`; fall back to the full dim
    (full-extent blocks are always legal)."""
    for c in candidates:
        if c <= dim and dim % c == 0:
            return c
    return dim


# ------------------- tiled linear: matmul + fused epilogue -------------------

def _epilogue(out, b_ref, r_ref, act):
    if b_ref is not None:
        out = out + b_ref[...].astype(jnp.float32)
    if act == "gelu":
        c = jnp.float32(math.sqrt(2.0 / math.pi))
        out = 0.5 * out * (1.0 + jnp.tanh(c * (out + 0.044715 * out * out * out)))
    if r_ref is not None:
        out = out + r_ref[...].astype(jnp.float32)
    return out


def _make_linear_kernel(n_k, has_bias, act, has_residual):
    if n_k == 1:
        # Single-pass contraction: no accumulator scratch, no init/finalize.
        def kernel(*refs):
            it = iter(refs)
            x_ref = next(it)
            w_ref = next(it)
            b_ref = next(it) if has_bias else None
            r_ref = next(it) if has_residual else None
            o_ref = next(it)
            out = jnp.dot(x_ref[...], w_ref[...],
                          preferred_element_type=jnp.float32)
            o_ref[...] = _epilogue(out, b_ref, r_ref, act).astype(o_ref.dtype)
        return kernel

    def kernel(*refs):
        it = iter(refs)
        x_ref = next(it)
        w_ref = next(it)
        b_ref = next(it) if has_bias else None
        r_ref = next(it) if has_residual else None
        o_ref = next(it)
        acc_ref = next(it)

        @pl.when(pl.program_id(2) == 0)
        def _():
            acc_ref[...] = jnp.zeros_like(acc_ref)

        acc_ref[...] += jnp.dot(x_ref[...], w_ref[...],
                                preferred_element_type=jnp.float32)

        @pl.when(pl.program_id(2) == n_k - 1)
        def _():
            o_ref[...] = _epilogue(acc_ref[...], b_ref, r_ref, act).astype(o_ref.dtype)

    return kernel


def linear(x, w, b=None, *, act=None, residual=None):
    """(M, K) @ (K, N) [+ bias] [-> GELU] [+ residual] -> (M, N), tiled on MXU."""
    m, k = x.shape
    n = w.shape[1]
    tm = _choose_tile(m, (512, 256, 128, 64, 32, 16, 8))
    tn = _choose_tile(n, (512, 256, 128))
    # Collapse the reduction axis to one pass when K fits (GPT-2: 768/1024).
    tk = k if k <= 1024 else _choose_tile(k, (512, 256, 128))
    n_k = k // tk
    grid = (m // tm, n // tn, n_k)

    in_specs = [pl.BlockSpec((tm, tk), lambda i, j, kk: (i, kk)),
                pl.BlockSpec((tk, tn), lambda i, j, kk: (kk, j))]
    args = [x, w]
    bytes_accessed = (x.size * x.dtype.itemsize + w.size * w.dtype.itemsize
                      + m * n * x.dtype.itemsize)
    if b is not None:
        in_specs.append(pl.BlockSpec((1, tn), lambda i, j, kk: (0, j)))
        args.append(b.reshape(1, n))
        bytes_accessed += b.size * b.dtype.itemsize
    if residual is not None:
        in_specs.append(pl.BlockSpec((tm, tn), lambda i, j, kk: (i, j)))
        args.append(residual)
        bytes_accessed += residual.size * residual.dtype.itemsize

    scratch = [] if n_k == 1 else [pltpu.VMEM((tm, tn), jnp.float32)]
    kernel = _make_linear_kernel(n_k, b is not None, act, residual is not None)
    cost = pl.CostEstimate(flops=2 * m * n * k,
                           transcendentals=(m * n if act == "gelu" else 0),
                           bytes_accessed=int(bytes_accessed))
    return pl.pallas_call(
        kernel,
        out_shape=jax.ShapeDtypeStruct((m, n), x.dtype),
        grid=grid,
        in_specs=in_specs,
        out_specs=pl.BlockSpec((tm, tn), lambda i, j, kk: (i, j)),
        scratch_shapes=scratch,
        compiler_params=pltpu.CompilerParams(
            dimension_semantics=("parallel", "parallel", "arbitrary"),
            vmem_limit_bytes=_VMEM_LIMIT),
        cost_estimate=cost,
    )(*args)


# ------------------------------- LayerNorm -----------------------------------

def _layernorm_kernel(x_ref, g_ref, b_ref, o_ref, *, eps):
    x = x_ref[...].astype(jnp.float32)
    mean = jnp.mean(x, axis=-1, keepdims=True)
    var = jnp.mean(jnp.square(x - mean), axis=-1, keepdims=True)  # unbiased=False
    norm = (x - mean) * jax.lax.rsqrt(var + eps)                  # EUP rsqrt
    o_ref[...] = (g_ref[...] * norm + b_ref[...]).astype(o_ref.dtype)


def layernorm(x, scale, shift, eps=1e-5):
    """x: (N, D) row-tiled layernorm (stats in f32, output in x.dtype)."""
    n, d = x.shape
    rows = _choose_tile(n, (1024, 512, 256, 128, 64, 32, 16, 8))
    return pl.pallas_call(
        functools.partial(_layernorm_kernel, eps=eps),
        out_shape=jax.ShapeDtypeStruct((n, d), x.dtype),
        grid=(n // rows,),
        in_specs=[pl.BlockSpec((rows, d), lambda i: (i, 0)),
                  pl.BlockSpec((1, d), lambda i: (0, 0)),
                  pl.BlockSpec((1, d), lambda i: (0, 0))],
        out_specs=pl.BlockSpec((rows, d), lambda i: (i, 0)),
        compiler_params=pltpu.CompilerParams(
            dimension_semantics=("parallel",),
            vmem_limit_bytes=_VMEM_LIMIT),
    )(x, scale.reshape(1, d), shift.reshape(1, d))


# ------------------------------- attention -----------------------------------

def _attn_kernel(q_ref, k_ref, v_ref, o_ref, acc_ref, *, n_heads, head_dim, scale):
    tq = q_ref.shape[1]
    t_kv = k_ref.shape[1]
    q_start = pl.program_id(1) * tq
    row = lax.broadcasted_iota(jnp.int32, (tq, t_kv), 0) + q_start
    col = lax.broadcasted_iota(jnp.int32, (tq, t_kv), 1)
    causal = col > row                                    # mask above the diagonal
    for h in range(n_heads):                              # static unroll; ref-sliced heads
        lo = h * head_dim
        q = q_ref[0, :, lo:lo + head_dim] * jnp.asarray(scale, q_ref.dtype)
        k = k_ref[0, :, lo:lo + head_dim]
        v = v_ref[0, :, lo:lo + head_dim]
        # contract (tq,hd) x (tkv,hd) over hd — no explicit K transpose/relayout
        s = lax.dot_general(q, k, (((1,), (1,)), ((), ())),
                            preferred_element_type=jnp.float32)
        s = jnp.where(causal, jnp.float32(-1e30), s)      # finite mask (NaN-safe)
        p = jnp.exp(s - jnp.max(s, axis=-1, keepdims=True))
        l = jnp.sum(p, axis=-1, keepdims=True)
        p = (p * pl.reciprocal(l, approx=True)).astype(v.dtype)   # EUP reciprocal
        acc_ref[:, lo:lo + head_dim] = jnp.dot(p, v,
                                               preferred_element_type=jnp.float32)
    o_ref[0] = acc_ref[...].astype(o_ref.dtype)           # one lane-dense (tq, D) store


def causal_attention(qkv, n_heads, head_dim):
    """qkv: (B, T, 3D) fused projections -> context (B, T, D)."""
    b, t, _ = qkv.shape
    d = n_heads * head_dim
    tq = _choose_tile(t, (256, 128, 64, 32, 16, 8))
    kernel = functools.partial(_attn_kernel, n_heads=n_heads, head_dim=head_dim,
                               scale=1.0 / math.sqrt(head_dim))
    # Same fused-QKV array passed three times with different BlockSpec views:
    # Q rows tiled per grid step, K/V as full-row blocks (lane-block 0/1/2).
    return pl.pallas_call(
        kernel,
        out_shape=jax.ShapeDtypeStruct((b, t, d), qkv.dtype),
        grid=(b, t // tq),
        in_specs=[pl.BlockSpec((1, tq, d), lambda i, j: (i, j, 0)),
                  pl.BlockSpec((1, t, d), lambda i, j: (i, 0, 1)),
                  pl.BlockSpec((1, t, d), lambda i, j: (i, 0, 2))],
        out_specs=pl.BlockSpec((1, tq, d), lambda i, j: (i, j, 0)),
        scratch_shapes=[pltpu.VMEM((tq, d), jnp.float32)],
        compiler_params=pltpu.CompilerParams(
            dimension_semantics=("parallel", "parallel"),
            vmem_limit_bytes=_VMEM_LIMIT),
    )(qkv, qkv, qkv)


# ----------------------------- model forward ---------------------------------

def transformer_block(x, p, cfg):
    b, t, d = x.shape
    h = cfg["n_heads"]
    hd = d // h
    x_flat = x.reshape(b * t, d)

    # --- attention sub-block: LN -> fused QKV -> attn -> out-proj (+bias+residual) ---
    x2 = layernorm(x_flat, p["n1_s"], p["n1_b"])
    qkv = linear(x2, p["wqkv"])                               # qkv_bias=False
    ctx = causal_attention(qkv.reshape(b, t, 3 * d), h, hd)   # (B, T, D)
    x_flat = linear(ctx.reshape(b * t, d), p["wo"], p["bo"], residual=x_flat)

    # --- feed-forward sub-block: LN -> (w1+b1+GELU) -> (w2+b2+residual) ---
    x2 = layernorm(x_flat, p["n2_s"], p["n2_b"])
    hdn = linear(x2, p["w1"], p["b1"], act="gelu")
    x_flat = linear(hdn, p["w2"], p["b2"], residual=x_flat)
    return x_flat.reshape(b, t, d)


def gpt_forward(params, in_idx, cfg):
    b, t = in_idx.shape
    d = cfg["emb_dim"]
    v = cfg["vocab_size"]
    tok = jnp.take(params["tok_emb"], in_idx, axis=0)         # embedding gather (glue)
    pos = params["pos_emb"][:t]
    x = tok + pos[None, :, :]
    # drop_emb == identity (rate 0.0)
    for p in params["blocks"]:
        x = transformer_block(x, p, cfg)
    x2 = layernorm(x.reshape(b * t, d), params["fn_scale"], params["fn_shift"])
    logits = linear(x2, params["out_w"])                      # no bias; padded vocab
    if params["out_w"].shape[1] != v:
        logits = logits[:, :v]                                # drop lane-pad columns
    return logits.reshape(b, t, v)


# ----------------------------- param init ------------------------------------

def init_params(key, cfg):
    d = cfg["emb_dim"]
    v = cfg["vocab_size"]
    c = cfg["context_length"]
    h4 = 4 * d
    v_pad = ((v + 127) // 128) * 128      # lane-dense lm-head (50257 -> 50304)

    def nrm(k, shape, dtype=COMPUTE_DTYPE):
        return (0.02 * jax.random.normal(k, shape)).astype(dtype)

    keys = jax.random.split(key, 3 + cfg["n_layers"])
    params = {
        "tok_emb": nrm(keys[0], (v, d)),
        "pos_emb": nrm(keys[1], (c, d)),
        "fn_scale": jnp.ones((d,), jnp.float32),
        "fn_shift": jnp.zeros((d,), jnp.float32),
        "out_w": nrm(keys[2], (d, v_pad)),
        "blocks": [],
    }
    for layer in range(cfg["n_layers"]):
        lk = jax.random.split(keys[3 + layer], 6)
        params["blocks"].append({
            "wqkv": nrm(lk[0], (d, 3 * d)),   # fused [Wq | Wk | Wv]
            "wo": nrm(lk[1], (d, d)),
            "bo": jnp.zeros((d,), jnp.float32),
            "w1": nrm(lk[2], (d, h4)),
            "b1": nrm(lk[3], (h4,), jnp.float32),
            "w2": nrm(lk[4], (h4, d)),
            "b2": nrm(lk[5], (d,), jnp.float32),
            "n1_s": jnp.ones((d,), jnp.float32),
            "n1_b": jnp.zeros((d,), jnp.float32),
            "n2_s": jnp.ones((d,), jnp.float32),
            "n2_b": jnp.zeros((d,), jnp.float32),
        })
    return params


# ----------------------------- main -------------------------------------------

if __name__ == "__main__":
    cfg = {
        "vocab_size": 256,
        "context_length": 16,
        "emb_dim": 128,
        "n_heads": 4,
        "n_layers": 2,
        "drop_rate": 0.0,
        "qkv_bias": False,
    }

    key = jax.random.PRNGKey(0)
    pkey, ikey = jax.random.split(key)
    params = init_params(pkey, cfg)

    batch, seq = 2, 8
    in_idx = jax.random.randint(ikey, (batch, seq), 0, cfg["vocab_size"], dtype=jnp.int32)

    logits = gpt_forward(params, in_idx, cfg)
    logits = jax.block_until_ready(logits)
    assert logits.shape == (batch, seq, cfg["vocab_size"])
    assert bool(jnp.all(jnp.isfinite(logits.astype(jnp.float32))))
    print("KERNEL_OK")
</pallas_src>

<mosaic_0001>
module attributes {stable_mosaic.version = 11 : i64} {
  func.func @_layernorm_kernel(%arg0: i32, %arg1: memref<16x128xbf16, #tpu.memory_space<vmem>>, %arg2: memref<1x128xf32, #tpu.memory_space<vmem>>, %arg3: memref<1x128xf32, #tpu.memory_space<vmem>>, %arg4: memref<16x128xbf16, #tpu.memory_space<vmem>>) attributes {dimension_semantics = [#tpu.dimension_semantics<parallel>], iteration_bounds = array<i64: 1>, scalar_prefetch = 0 : i64, scratch_operands = 0 : i64, tpu.core_type = #tpu.core_type<tc>, window_params = [{transform_indices = @transform_0, window_bounds = array<i64: 16, 128>}, {pipeline_mode = #tpu.pipeline_mode<synchronous>, transform_indices = @transform_1, window_bounds = array<i64: 1, 128>}, {pipeline_mode = #tpu.pipeline_mode<synchronous>, transform_indices = @transform_2, window_bounds = array<i64: 1, 128>}, {transform_indices = @transform_3, window_bounds = array<i64: 16, 128>}]} {
    %c0 = arith.constant 0 : index
    %c0_0 = arith.constant 0 : index
    %0 = vector.load %arg1[%c0, %c0_0] : memref<16x128xbf16, #tpu.memory_space<vmem>>, vector<16x128xbf16>
    %1 = arith.extf %0 : vector<16x128xbf16> to vector<16x128xf32>
    %cst = arith.constant dense<0.000000e+00> : vector<16xf32>
    %2 = vector.multi_reduction <add>, %1, %cst [1] : vector<16x128xf32> to vector<16xf32>
    %3 = vector.shape_cast %2 : vector<16xf32> to vector<16x1xf32>
    %cst_1 = arith.constant 1.280000e+02 : f32
    %4 = vector.broadcast %cst_1 : f32 to vector<16x1xf32>
    %5 = arith.divf %3, %4 : vector<16x1xf32>
    %6 = vector.broadcast %5 : vector<16x1xf32> to vector<16x128xf32>
    %7 = arith.subf %1, %6 : vector<16x128xf32>
    %8 = arith.mulf %7, %7 : vector<16x128xf32>
    %cst_2 = arith.constant dense<0.000000e+00> : vector<16xf32>
    %9 = vector.multi_reduction <add>, %8, %cst_2 [1] : vector<16x128xf32> to vector<16xf32>
    %10 = vector.shape_cast %9 : vector<16xf32> to vector<16x1xf32>
    %cst_3 = arith.constant 1.280000e+02 : f32
    %11 = vector.broadcast %cst_3 : f32 to vector<16x1xf32>
    %12 = arith.divf %10, %11 : vector<16x1xf32>
    %13 = vector.broadcast %5 : vector<16x1xf32> to vector<16x128xf32>
    %14 = arith.subf %1, %13 : vector<16x128xf32>
    %cst_4 = arith.constant 9.99999974E-6 : f32
    %15 = vector.broadcast %cst_4 : f32 to vector<16x1xf32>
    %16 = arith.addf %12, %15 : vector<16x1xf32>
    %17 = math.rsqrt %16 : vector<16x1xf32>
    %18 = vector.broadcast %17 : vector<16x1xf32> to vector<16x128xf32>
    %19 = arith.mulf %14, %18 : vector<16x128xf32>
    %c0_5 = arith.constant 0 : index
    %c0_6 = arith.constant 0 : index
    %20 = vector.load %arg2[%c0_5, %c0_6] : memref<1x128xf32, #tpu.memory_space<vmem>>, vector<1x128xf32>
    %21 = vector.broadcast %20 : vector<1x128xf32> to vector<16x128xf32>
    %22 = arith.mulf %21, %19 : vector<16x128xf32>
    %c0_7 = arith.constant 0 : index
    %c0_8 = arith.constant 0 : index
    %23 = vector.load %arg3[%c0_7, %c0_8] : memref<1x128xf32, #tpu.memory_space<vmem>>, vector<1x128xf32>
    %24 = vector.broadcast %23 : vector<1x128xf32> to vector<16x128xf32>
    %25 = arith.addf %22, %24 : vector<16x128xf32>
    %26 = arith.truncf %25 : vector<16x128xf32> to vector<16x128xbf16>
    %c0_9 = arith.constant 0 : index
    %c0_10 = arith.constant 0 : index
    %27 = vector.load %arg4[%c0_9, %c0_10] : memref<16x128xbf16, #tpu.memory_space<vmem>>, vector<16x128xbf16>
    tpu.vector_store %arg4[%c0_9, %c0_10], %26 {strides = array<i32>} : memref<16x128xbf16, #tpu.memory_space<vmem>>, vector<16x128xbf16>,
    return
  }
  func.func @transform_0(%arg0: i32) -> (i32, i32) {
    %c0_i32 = arith.constant 0 : i32
    %c0_i32_0 = arith.constant 0 : i32
    return %arg0, %c0_i32 : i32, i32
  }
  func.func @transform_1(%arg0: i32) -> (i32, i32) {
    %c0_i32 = arith.constant 0 : i32
    %c0_i32_0 = arith.constant 0 : i32
    %c0_i32_1 = arith.constant 0 : i32
    return %c0_i32, %c0_i32_0 : i32, i32
  }
  func.func @transform_2(%arg0: i32) -> (i32, i32) {
    %c0_i32 = arith.constant 0 : i32
    %c0_i32_0 = arith.constant 0 : i32
    %c0_i32_1 = arith.constant 0 : i32
    return %c0_i32, %c0_i32_0 : i32, i32
  }
  func.func @transform_3(%arg0: i32) -> (i32, i32) {
    %c0_i32 = arith.constant 0 : i32
    %c0_i32_0 = arith.constant 0 : i32
    return %arg0, %c0_i32 : i32, i32
  }
}

</mosaic_0001>

<llo_original>
// kernel: tpu_custom_call.1
$region0: #{tpu_custom_call.1}
  #allocation0 [shape = 'u32[]', space=smem, size = 0x4, offset = 0x4, fixed_abs, tag = 'smem constant byte address 0x4 - core index']
  #allocation1 [shape = 'u32[144,128]{1,0:T(1,128)}', space=vmem, size = 0x12000, scoped, tag = 'internal scratch']
  %s0 = inlined_call_operand.hbm [shape: bf16[16,128], index: 0, kind: input, shape index: {}]
  %s1 = inlined_call_operand.hbm [shape: f32[1,128], index: 1, kind: input, shape index: {}]
  %s2 = inlined_call_operand.hbm [shape: f32[1,128], index: 2, kind: input, shape index: {}]
  %s3 = inlined_call_operand.hbm [shape: bf16[16,128], index: 3, kind: output, shape index: {}]
  %s4 = sld [smem:[#allocation0]]
  $region34: #{tpu_custom_call.1} parent=0
    _
  %s6 = ssub.s32 1, %s4
  %s7 = scalar_select 0, %s6, %s4
  $region1: #{tpu_custom_call.1} parent=0
    #allocation2 [shape = 'u8[4096]{0}', space=vmem, size = 0x1000, scoped, tag = 'input window, operand 0, single buffered']
    #allocation3 [shape = 's32[1]{0}', space=sflag, size = 0x4, scoped, tag = 'scoped memory for tpu_custom_call.1']
    #allocation4 [shape = 's32[1]{0}', space=sflag, size = 0x4, scoped, tag = 'scoped memory for tpu_custom_call.1']
    #allocation5 [shape = 'u8[512]{0}', space=vmem, size = 0x400, scoped, tag = 'input window, operand 1, single buffered']
    #allocation6 [shape = 's32[1]{0}', space=sflag, size = 0x4, scoped, tag = 'scoped memory for tpu_custom_call.1']
    #allocation7 [shape = 'u8[512]{0}', space=vmem, size = 0x400, scoped, tag = 'input window, operand 2, single buffered']
    #allocation8 [shape = 'u8[4096]{0}', space=vmem, size = 0x1000, scoped, tag = 'output window, operand 0, single buffered']
    %8 = vsyncpa [#allocation3], 0
    %9 = vsyncpa [#allocation6], 0
    %10 = vsyncpa [#allocation4], 0
    // Predicated region
    $region2: #{tpu_custom_call.1} parent=1 // pred_check
      _
    $region3: #{tpu_custom_call.1} parent=1 // pred_check_branch
      %12 = sbr.rel (0) target = $region5
    $region4: #{tpu_custom_call.1} parent=1 // pred_region
      %s14 = ssub.s32 128, 128
      %15 = vsyncadd [#allocation3], %s14
      %s16 = sshll.u32 [#allocation2], 4
      %s17 = int_to_ptr.vmem [resolvable:$true] %s16
      %22 = dma.hbm_to_vmem [thread:$0]  %s0, 128, %s17, [#allocation3], 64, 64, 4
    $region5: #{tpu_custom_call.1} parent=1 // pred_fallthru
      _
    // Predicated region
    $region6: #{tpu_custom_call.1} parent=1 // pred_check
      _
    $region7: #{tpu_custom_call.1} parent=1 // pred_check_branch
      %24 = sbr.rel (0) target = $region9
    $region8: #{tpu_custom_call.1} parent=1 // pred_region
      %s26 = ssub.s32 16, 16
      %27 = vsyncadd [#allocation6], %s26
      %s29 = sshll.u32 [#allocation5], 4
      %s30 = int_to_ptr.vmem [resolvable:$true] %s29
      %32 = dma.hbm_to_vmem [thread:$0]  %s1, 16, %s30, [#allocation6]
    $region9: #{tpu_custom_call.1} parent=1 // pred_fallthru
      _
    // Predicated region
    $region10: #{tpu_custom_call.1} parent=1 // pred_check
      _
    $region11: #{tpu_custom_call.1} parent=1 // pred_check_branch
      %34 = sbr.rel (0) target = $region13
    $region12: #{tpu_custom_call.1} parent=1 // pred_region
      %s36 = ssub.s32 16, 16
      %37 = vsyncadd [#allocation6], %s36
      %s39 = sshll.u32 [#allocation7], 4
      %s40 = int_to_ptr.vmem [resolvable:$true] %s39
      %42 = dma.hbm_to_vmem [thread:$0]  %s2, 16, %s40, [#allocation6]
    $region13: #{tpu_custom_call.1} parent=1 // pred_fallthru
      _
    // Predicated region
    $region14: #{tpu_custom_call.1} parent=1 // pred_check
      _
    $region15: #{tpu_custom_call.1} parent=1 // pred_check_branch
      %44 = sbr.rel (0) target = $region17
    $region16: #{tpu_custom_call.1} parent=1 // pred_region
      %45 = dma.done [#allocation3], 128
    $region17: #{tpu_custom_call.1} parent=1 // pred_fallthru
      _
    // Predicated region
    $region18: #{tpu_custom_call.1} parent=1 // pred_check
      _
    $region19: #{tpu_custom_call.1} parent=1 // pred_check_branch
      %47 = sbr.rel (0) target = $region21
    $region20: #{tpu_custom_call.1} parent=1 // pred_region
      %48 = dma.done [#allocation6], 16
    $region21: #{tpu_custom_call.1} parent=1 // pred_fallthru
      _
    // Predicated region
    $region22: #{tpu_custom_call.1} parent=1 // pred_check
      _
    $region23: #{tpu_custom_call.1} parent=1 // pred_check_branch
      %50 = sbr.rel (0) target = $region25
    $region24: #{tpu_custom_call.1} parent=1 // pred_region
      %51 = dma.done [#allocation6], 16
    $region25: #{tpu_custom_call.1} parent=1 // pred_fallthru
      _
    %v52 = vld [vmem:[#allocation2] sm:$0xf]
    %v53 = vld [vmem:[#allocation2 + $0x4] sm:$0xf]
    %v54 = vunpack.c.l.bf16 %v52
    %v55 = vunpack.c.l.bf16 %v53
    %56 = vadd.xlane.f32.xlu0 %v54
    %v57 = vpop.xlane.xlu0 %56
    %58 = vadd.xlane.f32.xlu0 %v55
    %v59 = vpop.xlane.xlu0 %58
    %v60 = vrcp.pop 128.0
    %v61 = vmul.f32 %v57, %v60
    %v62 = vmul.f32 %v59, %v60
    %v63 = vsub.f32 %v54, %v61
    %v64 = vsub.f32 %v55, %v62
    %v65 = vmul.f32 %v63, %v63
    %v66 = vmul.f32 %v64, %v64
    %67 = vadd.xlane.f32.xlu0 %v65
    %v68 = vpop.xlane.xlu0 %67
    %69 = vadd.xlane.f32.xlu0 %v66
    %v70 = vpop.xlane.xlu0 %69
    %v71 = vmul.f32 %v68, %v60
    %v72 = vmul.f32 %v70, %v60
    %v73 = vadd.f32 %v71, 1e-05
    %v74 = vadd.f32 %v72, 1e-05
    %v75 = vrsqrt.pop %v73
    %v76 = vrsqrt.pop %v74
    %v77 = vmul.f32 %v63, %v75
    %v78 = vmul.f32 %v64, %v76
    %v79 = vld [vmem:[#allocation5] sm:$0x1]
    %v81 = vlaneseq
    %v82 = vshrl.u32 %v81, 7
    %v83 = vsub.s32 0, %v82
    %v84 = vrot.slane %v79, %v83
    %v86 = vmul.f32 %v84, %v77
    %v87 = vmul.f32 %v84, %v78
    %v88 = vld [vmem:[#allocation7] sm:$0x1]
    %v90 = vlaneseq
    %v91 = vshrl.u32 %v90, 7
    %v92 = vsub.s32 0, %v91
    %v93 = vrot.slane %v88, %v92
    %v95 = vadd.f32 %v86, %v93
    %v96 = vadd.f32 %v87, %v93
    %v97 = vpack.c.bf16 %v96, %v95
    %v99 = vunpack.c.l.b16 %v97
    %v100 = vunpack.c.h.b16 %v97
    %v101 = vpack.c.b16 %v99, %v99
    %v102 = vpack.c.b16 %v100, %v100
    %105 = vst [vmem:[#allocation8] sm:$0xf] %v101
    %106 = vst [vmem:[#allocation8 + $0x4] sm:$0xf] %v102
    // Predicated region
    $region26: #{tpu_custom_call.1} parent=1 // pred_check
      _
    $region27: #{tpu_custom_call.1} parent=1 // pred_check_branch
      %108 = sbr.rel (0) target = $region29
    $region28: #{tpu_custom_call.1} parent=1 // pred_region
      %s110 = ssub.s32 128, 128
      %111 = vsyncadd [#allocation4], %s110
      %s112 = sshll.u32 [#allocation8], 4
      %s113 = int_to_ptr.vmem [resolvable:$true] %s112
      %118 = dma.vmem_to_hbm [thread:$0]  %s113, 128, %s3, [#allocation4], 64, 64, 4
    $region29: #{tpu_custom_call.1} parent=1 // pred_fallthru
      _
    // Predicated region
    $region30: #{tpu_custom_call.1} parent=1 // pred_check
      _
    $region31: #{tpu_custom_call.1} parent=1 // pred_check_branch
      %120 = sbr.rel (0) target = $region33
    $region32: #{tpu_custom_call.1} parent=1 // pred_region
      %121 = dma.done [#allocation4], 128
    $region33: #{tpu_custom_call.1} parent=1 // pred_fallthru
      _
    %122 = vsyncpa [#allocation3], 1
    %123 = vsyncpa [#allocation6], 1
    %124 = vsyncpa [#allocation4], 1

</llo_original>
